<compile_context>
chip_gen: v5e
topology: v5e:2x2
jax: 0.10.0
libtpu: 0.0.40
codegen_flags: <defaults>
</compile_context>

<pallas_src>
import functools

import jax
import jax.numpy as jnp
from jax import lax
from jax.experimental import pallas as pl
from jax.experimental.pallas import tpu as pltpu

_NEG_INF = -1e30  # large finite negative: safe even if a row were fully masked


def _flash_causal_kernel(xq_ref, xkv_ref, wq_ref, wkv_ref, o_ref,
                         q_sc, m_sc, l_sc, acc_sc,
                         *, d_out, tile, matmul_dtype):
    # xq_ref/xkv_ref: (1, T, d_in)   q-tile / kv-tile slab of x
    # wq_ref: (d_in, d_out), wkv_ref: (d_in, 2*d_out)  (resident in VMEM)
    # o_ref:  (1, T, d_out)
    qi = pl.program_id(1)   # query-tile index   ("parallel")
    ki = pl.program_id(2)   # key/value-tile idx ("arbitrary", innermost)

    # ---- per-(batch, q-tile) init: project + pre-scale Q once, reset softmax state
    @pl.when(ki == 0)
    def _init():
        xq = xq_ref[0].astype(matmul_dtype)                                  # (T, d_in)
        q = jnp.dot(xq, wq_ref[...], preferred_element_type=jnp.float32)     # (T, d_out)
        # scale Q (T*d_out elems) instead of scores (T*T elems)
        q_sc[...] = (q * (1.0 / (d_out ** 0.5))).astype(matmul_dtype)
        m_sc[...] = jnp.full_like(m_sc, _NEG_INF)
        l_sc[...] = jnp.zeros_like(l_sc)
        acc_sc[...] = jnp.zeros_like(acc_sc)

    # ---- causal tile skip: kv tiles strictly above the diagonal contribute nothing
    @pl.when(ki <= qi)
    def _compute():
        xkv = xkv_ref[0].astype(matmul_dtype)                                # (T, d_in)
        # fused K|V projection: one MXU matmul with 2*d_out output lanes
        kv = jnp.dot(xkv, wkv_ref[...], preferred_element_type=jnp.float32)  # (T, 2*d_out)
        k = kv[:, :d_out].astype(matmul_dtype)
        v = kv[:, d_out:].astype(matmul_dtype)

        # scores = (Q/sqrt(d)) @ K^T, contracting feature dims directly (no K^T copy)
        scores = lax.dot_general(q_sc[...], k, (((1,), (1,)), ((), ())),
                                 preferred_element_type=jnp.float32)          # (T, T)

        # causal mask in global coordinates (only triggers on the diagonal tile)
        g_row = qi * tile + lax.broadcasted_iota(jnp.int32, scores.shape, 0)
        g_col = ki * tile + lax.broadcasted_iota(jnp.int32, scores.shape, 1)
        scores = jnp.where(g_col > g_row, _NEG_INF, scores)

        # online softmax update (all f32 on VPU/EUP — v5e-safe)
        m_prev = m_sc[...]
        m_new = jnp.maximum(m_prev, jnp.max(scores, axis=-1, keepdims=True))
        alpha = jnp.exp(m_prev - m_new)
        p = jnp.exp(scores - m_new)
        l_sc[...] = alpha * l_sc[...] + jnp.sum(p, axis=-1, keepdims=True)
        acc_sc[...] = alpha * acc_sc[...] + jnp.dot(
            p.astype(matmul_dtype), v, preferred_element_type=jnp.float32)
        m_sc[...] = m_new

    # ---- finalize on the last kv step (output block is resident across ki)
    @pl.when(ki == pl.num_programs(2) - 1)
    def _finalize():
        inv_l = pl.reciprocal(l_sc[...], approx=True)      # EUP slot, ~free
        o_ref[0] = (acc_sc[...] * inv_l).astype(o_ref.dtype)


def causal_attention(x, w_query, w_key, w_value, *, matmul_dtype=jnp.bfloat16):
    """Causal single-head attention, eval mode.

    x: (B, S, d_in); w_*: (d_in, d_out) pre-transposed nn.Linear weights.
    matmul_dtype: dtype fed to the MXU (bf16 default; f32 for exact-ish math).
    """
    B, S, d_in = x.shape
    d_out = w_query.shape[1]

    # Sequence tile (q tile == kv tile). 128 keeps (T,T) scores at 64 KiB f32;
    # fall back to the full sequence when S is small / not 128-aligned.
    T = 128 if S % 128 == 0 else S
    nq = S // T
    nkv = S // T

    # Fused K|V weight; cast once so the MXU sees matmul_dtype operands.
    w_q = w_query.astype(matmul_dtype)
    w_kv = jnp.concatenate([w_key, w_value], axis=1).astype(matmul_dtype)

    kernel = functools.partial(_flash_causal_kernel, d_out=d_out, tile=T,
                               matmul_dtype=matmul_dtype)

    return pl.pallas_call(
        kernel,
        out_shape=jax.ShapeDtypeStruct((B, S, d_out), x.dtype),
        grid_spec=pltpu.PrefetchScalarGridSpec(
            num_scalar_prefetch=0,
            grid=(B, nq, nkv),
            in_specs=[
                pl.BlockSpec((1, T, d_in), lambda b, qi, ki: (b, qi, 0)),   # x for Q tile
                pl.BlockSpec((1, T, d_in), lambda b, qi, ki: (b, ki, 0)),   # x for K/V tile
                # Constant index_map: same block every step, so the pipeline re-uses
                # it; double-buffer cost is 2 * d_in * 3*d_out * 2B — negligible here.
                pl.BlockSpec((d_in, d_out), lambda b, qi, ki: (0, 0)),
                pl.BlockSpec((d_in, 2 * d_out), lambda b, qi, ki: (0, 0)),
            ],
            out_specs=pl.BlockSpec((1, T, d_out), lambda b, qi, ki: (b, qi, 0)),
            scratch_shapes=[
                pltpu.VMEM((T, d_out), matmul_dtype),   # pre-scaled Q cache
                pltpu.VMEM((T, 1), jnp.float32),        # running max m
                pltpu.VMEM((T, 1), jnp.float32),        # running denom l
                pltpu.VMEM((T, d_out), jnp.float32),    # output accumulator
            ],
        ),
        compiler_params=pltpu.CompilerParams(
            dimension_semantics=("parallel", "parallel", "arbitrary"),
            vmem_limit_bytes=32 * 1024 * 1024,
        ),
    )(x, x, w_q, w_kv)


def causal_attention_ref(x, w_query, w_key, w_value):
    """Pure-JAX f32 reference mirroring the PyTorch forward (eval mode)."""
    d_out = w_query.shape[1]
    q = x @ w_query
    k = x @ w_key
    v = x @ w_value
    scores = jnp.einsum("bqd,bkd->bqk", q, k) / (d_out ** 0.5)
    S = x.shape[1]
    mask = jnp.triu(jnp.ones((S, S), dtype=bool), k=1)
    scores = jnp.where(mask[None, :, :], -jnp.inf, scores)
    attn = jax.nn.softmax(scores, axis=-1)
    return attn @ v


if __name__ == "__main__":
    # Module config (deterministic, synthetic): d_in=16, d_out=16,
    # context_length = seq = 8, dropout = 0.0, qkv_bias = False.
    B, S, d_in, d_out = 2, 8, 16, 16

    key = jax.random.PRNGKey(0)
    kx, kq, kk, kv = jax.random.split(key, 4)

    x = jax.random.normal(kx, (B, S, d_in), dtype=jnp.float32)
    # nn.Linear default init ~ U(-1/sqrt(d_in), 1/sqrt(d_in)); weights stored
    # as (d_in, d_out), i.e. already transposed for x @ W.
    bound = 1.0 / (d_in ** 0.5)
    w_query = jax.random.uniform(kq, (d_in, d_out), jnp.float32, -bound, bound)
    w_key = jax.random.uniform(kk, (d_in, d_out), jnp.float32, -bound, bound)
    w_value = jax.random.uniform(kv, (d_in, d_out), jnp.float32, -bound, bound)

    ref = causal_attention_ref(x, w_query, w_key, w_value)

    # Default (perf) path: bf16 MXU operands, f32 accumulate, approx reciprocal.
    out_bf16 = jax.block_until_ready(causal_attention(x, w_query, w_key, w_value))
    assert out_bf16.shape == (B, S, d_out)
    assert jnp.allclose(out_bf16, ref, atol=5e-2, rtol=5e-2), "bf16 path mismatch vs reference"

    # f32 MXU path: tight check (only approx-reciprocal differs from the reference).
    out_f32 = jax.block_until_ready(
        causal_attention(x, w_query, w_key, w_value, matmul_dtype=jnp.float32))
    assert jnp.allclose(out_f32, ref, atol=1e-2, rtol=1e-2), "f32 path mismatch vs reference"

    print("KERNEL_OK")
</pallas_src>

<mosaic_0001>
module attributes {stable_mosaic.version = 11 : i64} {
  func.func @_flash_causal_kernel(%arg0: i32, %arg1: i32, %arg2: i32, %arg3: memref<1x8x16xf32, #tpu.memory_space<vmem>>, %arg4: memref<1x8x16xf32, #tpu.memory_space<vmem>>, %arg5: memref<16x16xbf16, #tpu.memory_space<vmem>>, %arg6: memref<16x32xbf16, #tpu.memory_space<vmem>>, %arg7: memref<1x8x16xf32, #tpu.memory_space<vmem>>, %arg8: memref<8x16xbf16, #tpu.memory_space<vmem>>, %arg9: memref<8x1xf32, #tpu.memory_space<vmem>>, %arg10: memref<8x1xf32, #tpu.memory_space<vmem>>, %arg11: memref<8x16xf32, #tpu.memory_space<vmem>>) attributes {dimension_semantics = [#tpu.dimension_semantics<parallel>, #tpu.dimension_semantics<parallel>, #tpu.dimension_semantics<arbitrary>], iteration_bounds = array<i64: 2, 1, 1>, scalar_prefetch = 0 : i64, scratch_operands = 4 : i64, tpu.core_type = #tpu.core_type<tc>, window_params = [{transform_indices = @transform_0, window_bounds = array<i64: 1, 8, 16>}, {transform_indices = @transform_1, window_bounds = array<i64: 1, 8, 16>}, {pipeline_mode = #tpu.pipeline_mode<synchronous>, transform_indices = @transform_2, window_bounds = array<i64: 16, 16>}, {pipeline_mode = #tpu.pipeline_mode<synchronous>, transform_indices = @transform_3, window_bounds = array<i64: 16, 32>}, {transform_indices = @transform_4, window_bounds = array<i64: 1, 8, 16>}]} {
    %c0_i32 = arith.constant 0 : i32
    %0 = arith.cmpi eq, %arg2, %c0_i32 : i32
    %1 = arith.extui %0 : i1 to i32
    %c0_i32_0 = arith.constant 0 : i32
    %2 = arith.cmpi ne, %1, %c0_i32_0 : i32
    scf.if %2 {
      %c0 = arith.constant 0 : index
      %c0_4 = arith.constant 0 : index
      %c0_5 = arith.constant 0 : index
      %9 = vector.load %arg3[%c0, %c0_4, %c0_5] : memref<1x8x16xf32, #tpu.memory_space<vmem>>, vector<1x8x16xf32>
      %10 = vector.shape_cast %9 : vector<1x8x16xf32> to vector<8x16xf32>
      %11 = arith.truncf %10 : vector<8x16xf32> to vector<8x16xbf16>
      %c0_6 = arith.constant 0 : index
      %c0_7 = arith.constant 0 : index
      %12 = vector.load %arg5[%c0_6, %c0_7] : memref<16x16xbf16, #tpu.memory_space<vmem>>, vector<16x16xbf16>
      %cst = arith.constant dense<0.000000e+00> : vector<8x16xf32>
      %13 = tpu.matmul %11, %12, %cst {dimension_numbers = #tpu.dot_dimension_numbers<[1], [0], [0], [1], [0, 0, 1, 1], [], []>} : vector<8x16xbf16>, vector<16x16xbf16>, vector<8x16xf32> -> vector<8x16xf32>
      %cst_8 = arith.constant 2.500000e-01 : f32
      %14 = vector.broadcast %cst_8 : f32 to vector<8x16xf32>
      %15 = arith.mulf %13, %14 : vector<8x16xf32>
      %16 = arith.truncf %15 : vector<8x16xf32> to vector<8x16xbf16>
      %c0_9 = arith.constant 0 : index
      %c0_10 = arith.constant 0 : index
      %17 = vector.load %arg8[%c0_9, %c0_10] : memref<8x16xbf16, #tpu.memory_space<vmem>>, vector<8x16xbf16>
      tpu.vector_store %arg8[%c0_9, %c0_10], %16 {strides = array<i32>} : memref<8x16xbf16, #tpu.memory_space<vmem>>, vector<8x16xbf16>,
      %cst_11 = arith.constant -1.000000e+30 : f32
      %18 = vector.broadcast %cst_11 : f32 to vector<8x1xf32>
      %c0_12 = arith.constant 0 : index
      %c0_13 = arith.constant 0 : index
      %19 = vector.load %arg9[%c0_12, %c0_13] : memref<8x1xf32, #tpu.memory_space<vmem>>, vector<8x1xf32>
      tpu.vector_store %arg9[%c0_12, %c0_13], %18 {strides = array<i32>} : memref<8x1xf32, #tpu.memory_space<vmem>>, vector<8x1xf32>,
      %cst_14 = arith.constant 0.000000e+00 : f32
      %20 = vector.broadcast %cst_14 : f32 to vector<8x1xf32>
      %c0_15 = arith.constant 0 : index
      %c0_16 = arith.constant 0 : index
      %21 = vector.load %arg10[%c0_15, %c0_16] : memref<8x1xf32, #tpu.memory_space<vmem>>, vector<8x1xf32>
      tpu.vector_store %arg10[%c0_15, %c0_16], %20 {strides = array<i32>} : memref<8x1xf32, #tpu.memory_space<vmem>>, vector<8x1xf32>,
      %cst_17 = arith.constant 0.000000e+00 : f32
      %22 = vector.broadcast %cst_17 : f32 to vector<8x16xf32>
      %c0_18 = arith.constant 0 : index
      %c0_19 = arith.constant 0 : index
      %23 = vector.load %arg11[%c0_18, %c0_19] : memref<8x16xf32, #tpu.memory_space<vmem>>, vector<8x16xf32>
      tpu.vector_store %arg11[%c0_18, %c0_19], %22 {strides = array<i32>} : memref<8x16xf32, #tpu.memory_space<vmem>>, vector<8x16xf32>,
    } else {
    }
    %3 = arith.cmpi sle, %arg2, %arg1 : i32
    %4 = arith.extui %3 : i1 to i32
    %c0_i32_1 = arith.constant 0 : i32
    %5 = arith.cmpi ne, %4, %c0_i32_1 : i32
    scf.if %5 {
      %c0 = arith.constant 0 : index
      %c0_4 = arith.constant 0 : index
      %c0_5 = arith.constant 0 : index
      %9 = vector.load %arg4[%c0, %c0_4, %c0_5] : memref<1x8x16xf32, #tpu.memory_space<vmem>>, vector<1x8x16xf32>
      %10 = vector.shape_cast %9 : vector<1x8x16xf32> to vector<8x16xf32>
      %11 = arith.truncf %10 : vector<8x16xf32> to vector<8x16xbf16>
      %c0_6 = arith.constant 0 : index
      %c0_7 = arith.constant 0 : index
      %12 = vector.load %arg6[%c0_6, %c0_7] : memref<16x32xbf16, #tpu.memory_space<vmem>>, vector<16x32xbf16>
      %cst = arith.constant dense<0.000000e+00> : vector<8x32xf32>
      %13 = tpu.matmul %11, %12, %cst {dimension_numbers = #tpu.dot_dimension_numbers<[1], [0], [0], [1], [0, 0, 1, 1], [], []>} : vector<8x16xbf16>, vector<16x32xbf16>, vector<8x32xf32> -> vector<8x32xf32>
      %14 = vector.extract_strided_slice %13 {offsets = [0, 0], sizes = [8, 16], strides = [1, 1]} : vector<8x32xf32> to vector<8x16xf32>
      %15 = arith.truncf %14 : vector<8x16xf32> to vector<8x16xbf16>
      %16 = vector.extract_strided_slice %13 {offsets = [0, 16], sizes = [8, 16], strides = [1, 1]} : vector<8x32xf32> to vector<8x16xf32>
      %17 = arith.truncf %16 : vector<8x16xf32> to vector<8x16xbf16>
      %c0_8 = arith.constant 0 : index
      %c0_9 = arith.constant 0 : index
      %18 = vector.load %arg8[%c0_8, %c0_9] : memref<8x16xbf16, #tpu.memory_space<vmem>>, vector<8x16xbf16>
      %cst_10 = arith.constant dense<0.000000e+00> : vector<8x8xf32>
      %19 = tpu.matmul %18, %15, %cst_10 {dimension_numbers = #tpu.dot_dimension_numbers<[1], [1], [0], [0], [0, 0, 1, 0], [], []>} : vector<8x16xbf16>, vector<8x16xbf16>, vector<8x8xf32> -> vector<8x8xf32>
      %c8_i32 = arith.constant 8 : i32
      %20 = arith.muli %arg1, %c8_i32 : i32
      %21 = tpu.iota {dimensions = array<i32: 0>} : vector<8x8xi32>
      %22 = vector.broadcast %20 : i32 to vector<8x8xi32>
      %23 = arith.addi %22, %21 : vector<8x8xi32>
      %c8_i32_11 = arith.constant 8 : i32
      %24 = arith.muli %arg2, %c8_i32_11 : i32
      %25 = tpu.iota {dimensions = array<i32: 1>} : vector<8x8xi32>
      %26 = vector.broadcast %24 : i32 to vector<8x8xi32>
      %27 = arith.addi %26, %25 : vector<8x8xi32>
      %28 = arith.cmpi sgt, %27, %23 : vector<8x8xi32>
      %cst_12 = arith.constant -1.000000e+30 : f32
      %29 = vector.broadcast %cst_12 : f32 to vector<8x8xf32>
      %30 = arith.select %28, %29, %19 : vector<8x8xi1>, vector<8x8xf32>
      %c0_13 = arith.constant 0 : index
      %c0_14 = arith.constant 0 : index
      %31 = vector.load %arg9[%c0_13, %c0_14] : memref<8x1xf32, #tpu.memory_space<vmem>>, vector<8x1xf32>
      %cst_15 = arith.constant dense<0xFF800000> : vector<8xf32>
      %32 = vector.multi_reduction <maximumf>, %30, %cst_15 [1] : vector<8x8xf32> to vector<8xf32>
      %33 = vector.shape_cast %32 : vector<8xf32> to vector<8x1xf32>
      %34 = arith.maximumf %31, %33 : vector<8x1xf32>
      %35 = arith.subf %31, %34 : vector<8x1xf32>
      %36 = math.exp %35 : vector<8x1xf32>
      %37 = vector.broadcast %34 : vector<8x1xf32> to vector<8x8xf32>
      %38 = arith.subf %30, %37 : vector<8x8xf32>
      %39 = math.exp %38 : vector<8x8xf32>
      %c0_16 = arith.constant 0 : index
      %c0_17 = arith.constant 0 : index
      %40 = vector.load %arg10[%c0_16, %c0_17] : memref<8x1xf32, #tpu.memory_space<vmem>>, vector<8x1xf32>
      %41 = arith.mulf %36, %40 : vector<8x1xf32>
      %cst_18 = arith.constant dense<0.000000e+00> : vector<8xf32>
      %42 = vector.multi_reduction <add>, %39, %cst_18 [1] : vector<8x8xf32> to vector<8xf32>
      %43 = vector.shape_cast %42 : vector<8xf32> to vector<8x1xf32>
      %44 = arith.addf %41, %43 : vector<8x1xf32>
      %c0_19 = arith.constant 0 : index
      %c0_20 = arith.constant 0 : index
      %45 = vector.load %arg10[%c0_19, %c0_20] : memref<8x1xf32, #tpu.memory_space<vmem>>, vector<8x1xf32>
      tpu.vector_store %arg10[%c0_19, %c0_20], %44 {strides = array<i32>} : memref<8x1xf32, #tpu.memory_space<vmem>>, vector<8x1xf32>,
      %c0_21 = arith.constant 0 : index
      %c0_22 = arith.constant 0 : index
      %46 = vector.load %arg11[%c0_21, %c0_22] : memref<8x16xf32, #tpu.memory_space<vmem>>, vector<8x16xf32>
      %47 = vector.broadcast %36 : vector<8x1xf32> to vector<8x16xf32>
      %48 = arith.mulf %47, %46 : vector<8x16xf32>
      %49 = arith.truncf %39 : vector<8x8xf32> to vector<8x8xbf16>
      %cst_23 = arith.constant dense<0.000000e+00> : vector<8x16xf32>
      %50 = tpu.matmul %49, %17, %cst_23 {dimension_numbers = #tpu.dot_dimension_numbers<[1], [0], [0], [1], [0, 0, 1, 1], [], []>} : vector<8x8xbf16>, vector<8x16xbf16>, vector<8x16xf32> -> vector<8x16xf32>
      %51 = arith.addf %48, %50 : vector<8x16xf32>
      %c0_24 = arith.constant 0 : index
      %c0_25 = arith.constant 0 : index
      %52 = vector.load %arg11[%c0_24, %c0_25] : memref<8x16xf32, #tpu.memory_space<vmem>>, vector<8x16xf32>
      tpu.vector_store %arg11[%c0_24, %c0_25], %51 {strides = array<i32>} : memref<8x16xf32, #tpu.memory_space<vmem>>, vector<8x16xf32>,
      %c0_26 = arith.constant 0 : index
      %c0_27 = arith.constant 0 : index
      %53 = vector.load %arg9[%c0_26, %c0_27] : memref<8x1xf32, #tpu.memory_space<vmem>>, vector<8x1xf32>
      tpu.vector_store %arg9[%c0_26, %c0_27], %34 {strides = array<i32>} : memref<8x1xf32, #tpu.memory_space<vmem>>, vector<8x1xf32>,
    } else {
    }
    %c0_i32_2 = arith.constant 0 : i32
    %6 = arith.cmpi eq, %arg2, %c0_i32_2 : i32
    %7 = arith.extui %6 : i1 to i32
    %c0_i32_3 = arith.constant 0 : i32
    %8 = arith.cmpi ne, %7, %c0_i32_3 : i32
    scf.if %8 {
      %c0 = arith.constant 0 : index
      %c0_4 = arith.constant 0 : index
      %9 = vector.load %arg10[%c0, %c0_4] : memref<8x1xf32, #tpu.memory_space<vmem>>, vector<8x1xf32>
      %10 = tpu.reciprocal %9 {approx = true} : vector<8x1xf32> -> vector<8x1xf32>
      %c0_5 = arith.constant 0 : index
      %c0_6 = arith.constant 0 : index
      %11 = vector.load %arg11[%c0_5, %c0_6] : memref<8x16xf32, #tpu.memory_space<vmem>>, vector<8x16xf32>
      %12 = vector.broadcast %10 : vector<8x1xf32> to vector<8x16xf32>
      %13 = arith.mulf %11, %12 : vector<8x16xf32>
      %c0_7 = arith.constant 0 : index
      %c0_8 = arith.constant 0 : index
      %c0_9 = arith.constant 0 : index
      %14 = vector.load %arg7[%c0_7, %c0_8, %c0_9] : memref<1x8x16xf32, #tpu.memory_space<vmem>>, vector<1x8x16xf32>
      %15 = vector.shape_cast %14 : vector<1x8x16xf32> to vector<8x16xf32>
      %16 = vector.shape_cast %13 : vector<8x16xf32> to vector<1x8x16xf32>
      tpu.vector_store %arg7[%c0_7, %c0_8, %c0_9], %16 {strides = array<i32>} : memref<1x8x16xf32, #tpu.memory_space<vmem>>, vector<1x8x16xf32>,
    } else {
    }
    return
  }
  func.func @transform_0(%arg0: i32, %arg1: i32, %arg2: i32) -> (i32, i32, i32) {
    %c0_i32 = arith.constant 0 : i32
    %c0_i32_0 = arith.constant 0 : i32
    return %arg0, %arg1, %c0_i32 : i32, i32, i32
  }
  func.func @transform_1(%arg0: i32, %arg1: i32, %arg2: i32) -> (i32, i32, i32) {
    %c0_i32 = arith.constant 0 : i32
    %c0_i32_0 = arith.constant 0 : i32
    return %arg0, %arg2, %c0_i32 : i32, i32, i32
  }
  func.func @transform_2(%arg0: i32, %arg1: i32, %arg2: i32) -> (i32, i32) {
    %c0_i32 = arith.constant 0 : i32
    %c0_i32_0 = arith.constant 0 : i32
    %c0_i32_1 = arith.constant 0 : i32
    return %c0_i32, %c0_i32_0 : i32, i32
  }
  func.func @transform_3(%arg0: i32, %arg1: i32, %arg2: i32) -> (i32, i32) {
    %c0_i32 = arith.constant 0 : i32
    %c0_i32_0 = arith.constant 0 : i32
    %c0_i32_1 = arith.constant 0 : i32
    return %c0_i32, %c0_i32_0 : i32, i32
  }
  func.func @transform_4(%arg0: i32, %arg1: i32, %arg2: i32) -> (i32, i32, i32) {
    %c0_i32 = arith.constant 0 : i32
    %c0_i32_0 = arith.constant 0 : i32
    return %arg0, %arg1, %c0_i32 : i32, i32, i32
  }
}

</mosaic_0001>

<llo_original>
// kernel: tpu_custom_call.1
$region0: #{tpu_custom_call.1}
  #allocation0 [shape = 'u32[]', space=smem, size = 0x4, offset = 0x4, fixed_abs, tag = 'smem constant byte address 0x4 - core index']
  #allocation1 [shape = 'u32[72,128]{1,0:T(1,128)}', space=vmem, size = 0x9000, scoped, tag = 'internal scratch']
  #allocation2 [shape = 'bf16[8,16]{1,0:T(8,128)(2,1)}', space=vmem, size = 0x800, scoped, tag = 'scratch operand']
  #allocation3 [shape = 'f32[8,1]{1,0:T(8,128)}', space=vmem, size = 0x1000, scoped, tag = 'scratch operand']
  #allocation4 [shape = 'f32[8,1]{1,0:T(8,128)}', space=vmem, size = 0x1000, scoped, tag = 'scratch operand']
  #allocation5 [shape = 'f32[8,16]{1,0:T(8,128)}', space=vmem, size = 0x1000, scoped, tag = 'scratch operand']
  %s0 = inlined_call_operand.hbm [shape: f32[2,8,16], index: 0, kind: input, shape index: {}]
  %s1 = inlined_call_operand.hbm [shape: f32[2,8,16], index: 1, kind: input, shape index: {}]
  %s2 = inlined_call_operand.hbm [shape: bf16[16,16], index: 2, kind: input, shape index: {}]
  %s3 = inlined_call_operand.hbm [shape: bf16[16,32], index: 3, kind: input, shape index: {}]
  %s4 = inlined_call_operand.hbm [shape: f32[2,8,16], index: 4, kind: output, shape index: {}]
  %s5 = sld [smem:[#allocation0]]
  $region77: #{tpu_custom_call.1} parent=0
    _
  %s7 = ssub.s32 1, %s5
  %s8 = scalar_select 0, %s7, %s5
  $region1: #{tpu_custom_call.1} parent=0
    #allocation6 [shape = 'u8[8192]{0}', space=vmem, size = 0x2000, scoped, tag = 'input window, operand 0']
    #allocation7 [shape = 's32[2]{0}', space=sflag, size = 0x8, scoped, tag = 'scoped memory for tpu_custom_call.1']
    #allocation8 [shape = 's32[2]{0}', space=sflag, size = 0x8, scoped, tag = 'scoped memory for tpu_custom_call.1']
    #allocation9 [shape = 'u8[8192]{0}', space=vmem, size = 0x2000, scoped, tag = 'input window, operand 1']
    #allocation10 [shape = 's32[2]{0}', space=sflag, size = 0x8, scoped, tag = 'scoped memory for tpu_custom_call.1']
    #allocation11 [shape = 'u8[4096]{0}', space=vmem, size = 0x1000, scoped, tag = 'input window, operand 2, single buffered']
    #allocation12 [shape = 'u8[4096]{0}', space=vmem, size = 0x1000, scoped, tag = 'input window, operand 3, single buffered']
    #allocation13 [shape = 's32[1]{0}', space=sflag, size = 0x4, scoped, tag = 'scoped memory for tpu_custom_call.1']
    #allocation14 [shape = 'u8[8192]{0}', space=vmem, size = 0x2000, scoped, tag = 'output window, operand 0']
    %9 = vsyncpa [#allocation7], 0
    %s10 = scalar_lea.sflag [#allocation7], 1
    %11 = vsyncpa %s10, 0
    %12 = vsyncpa [#allocation10], 0
    %s13 = scalar_lea.sflag [#allocation10], 1
    %14 = vsyncpa %s13, 0
    %15 = vsyncpa [#allocation13], 0
    %16 = vsyncpa [#allocation8], 0
    %s17 = scalar_lea.sflag [#allocation8], 1
    %18 = vsyncpa %s17, 0
    loop: start=0, step=1, limit=4
    $region2: #{tpu_custom_call.1} parent=1 // loop_pre_header
      _
    $region3: #{tpu_custom_call.1} parent=1 // loop_header
      %s20 = sphi 0, %s24
      %p21 = scmp.ge.s32.totalorder %s20, 4
      %s27 = sphi 0, %s46
      %s28 = sphi 0, %s42
      %s29 = sphi 0, %s38
      %s30 = sphi 0, %s27
      %s31 = sphi 0, %s28
      %s32 = sphi 0, %s29
      %s33 = sphi 0, %s30
      %s34 = sphi 0, %s31
      %s35 = sphi 0, %s32
      %s51 = sphi 0, %s53
      %s54 = sphi 0, %s51
      %s55 = sphi 0, %s54
      %s71 = sphi 0, %s55
      %s79 = sphi 0, %s81
      %s82 = sphi 0, %s79
      %s83 = sphi 0, %s82
      %s99 = sphi 0, %s83
      %s103 = sphi 0, %s103
      %s105 = sphi 0, %s103
      %s106 = sphi 0, %s105
      %s120 = sphi 0, %s106
      %s124 = sphi 0, %s124
      %s126 = sphi 0, %s124
      %s127 = sphi 0, %s126
      %s141 = sphi 0, %s127
      %s149 = sphi 0, %s151
      %s152 = sphi 0, %s149
      %s153 = sphi 0, %s152
      %s169 = sphi 0, %s153
    $region4: #{tpu_custom_call.1} parent=1 // loop_header_branch
      %23 = sbr.rel (%p21) target = $region8
    $region5: #{tpu_custom_call.1} parent=1 // loop_body
      %s25 = ssub.s32 %s20, 1
      %s26 = ssub.s32 %s20, 2
      %s36 = sadd.s32 1, %s29
      %p37 = scmp.ge.s32.totalorder %s36, 1
      %s38 = scalar_select %p37, 0, %s36
      %s39 = sadd.s32 1, %s28
      %s40 = scalar_select %p37, %s39, %s28
      %p41 = scmp.ge.s32.totalorder %s40, 1
      %s42 = scalar_select %p41, 0, %s40
      %s43 = sadd.s32 1, %s27
      %s44 = scalar_select %p41, %s43, %s27
      %p45 = scmp.ge.s32.totalorder %s44, 2
      %s46 = scalar_select %p45, 0, %s44
      %s47 = ssub.s32 %s27, %s46
      %s48 = ssub.s32 %s28, %s42
      %s49 = sor.u32 %s47, %s48
      %p50 = scmp.eq.s32.totalorder %s49, 0
      %s52 = sadd.s32 %s51, 1
      %s53 = scalar_select %p50, %s51, %s52
      %p56 = pneg %p50
      %p57 = scmp.eq.s32.totalorder %s20, 1
      %p58 = por %p56, %p57
      %p59 = scmp.ne.s32.totalorder %s51, %s54
      %p60 = scmp.eq.s32.totalorder %s20, 0
      %p61 = por %p59, %p60
      %p62 = scmp.ne.s32.totalorder %s51, %s54
      %p63 = scmp.eq.s32.totalorder %s25, 1
      %p64 = por %p62, %p63
      %p65 = scmp.ne.s32.totalorder %s54, %s55
      %p66 = scmp.eq.s32.totalorder %s25, 0
      %p67 = por %p65, %p66
      %p68 = scmp.ne.s32.totalorder %s54, %s55
      %p69 = scmp.eq.s32.totalorder %s26, 1
      %p70 = por %p68, %p69
      %p72 = scmp.ne.s32.totalorder %s55, %s71
      %p73 = scmp.eq.s32.totalorder %s26, 0
      %p74 = por %p72, %p73
      %s75 = ssub.s32 %s27, %s46
      %s76 = ssub.s32 %s29, %s38
      %s77 = sor.u32 %s75, %s76
      %p78 = scmp.eq.s32.totalorder %s77, 0
      %s80 = sadd.s32 %s79, 1
      %s81 = scalar_select %p78, %s79, %s80
      %p84 = pneg %p78
      %p85 = scmp.eq.s32.totalorder %s20, 1
      %p86 = por %p84, %p85
      %p87 = scmp.ne.s32.totalorder %s79, %s82
      %p88 = scmp.eq.s32.totalorder %s20, 0
      %p89 = por %p87, %p88
      %p90 = scmp.ne.s32.totalorder %s79, %s82
      %p91 = scmp.eq.s32.totalorder %s25, 1
      %p92 = por %p90, %p91
      %p93 = scmp.ne.s32.totalorder %s82, %s83
      %p94 = scmp.eq.s32.totalorder %s25, 0
      %p95 = por %p93, %p94
      %p96 = scmp.ne.s32.totalorder %s82, %s83
      %p97 = scmp.eq.s32.totalorder %s26, 1
      %p98 = por %p96, %p97
      %p100 = scmp.ne.s32.totalorder %s83, %s99
      %p101 = scmp.eq.s32.totalorder %s26, 0
      %p102 = por %p100, %p101
      %s104 = sadd.s32 %s103, 1
      %p107 = scmp.eq.s32.totalorder %s20, 1
      %p108 = scmp.ne.s32.totalorder %s103, %s105
      %p109 = scmp.eq.s32.totalorder %s20, 0
      %p110 = por %p108, %p109
      %p111 = scmp.ne.s32.totalorder %s103, %s105
      %p112 = scmp.eq.s32.totalorder %s25, 1
      %p113 = por %p111, %p112
      %p114 = scmp.ne.s32.totalorder %s105, %s106
      %p115 = scmp.eq.s32.totalorder %s25, 0
      %p116 = por %p114, %p115
      %p117 = scmp.ne.s32.totalorder %s105, %s106
      %p118 = scmp.eq.s32.totalorder %s26, 1
      %p119 = por %p117, %p118
      %p121 = scmp.ne.s32.totalorder %s106, %s120
      %p122 = scmp.eq.s32.totalorder %s26, 0
      %p123 = por %p121, %p122
      %s125 = sadd.s32 %s124, 1
      %p128 = scmp.eq.s32.totalorder %s20, 1
      %p129 = scmp.ne.s32.totalorder %s124, %s126
      %p130 = scmp.eq.s32.totalorder %s20, 0
      %p131 = por %p129, %p130
      %p132 = scmp.ne.s32.totalorder %s124, %s126
      %p133 = scmp.eq.s32.totalorder %s25, 1
      %p134 = por %p132, %p133
      %p135 = scmp.ne.s32.totalorder %s126, %s127
      %p136 = scmp.eq.s32.totalorder %s25, 0
      %p137 = por %p135, %p136
      %p138 = scmp.ne.s32.totalorder %s126, %s127
      %p139 = scmp.eq.s32.totalorder %s26, 1
      %p140 = por %p138, %p139
      %p142 = scmp.ne.s32.totalorder %s127, %s141
      %p143 = scmp.eq.s32.totalorder %s26, 0
      %p144 = por %p142, %p143
      %s145 = ssub.s32 %s27, %s46
      %s146 = ssub.s32 %s28, %s42
      %s147 = sor.u32 %s145, %s146
      %p148 = scmp.eq.s32.totalorder %s147, 0
      %s150 = sadd.s32 %s149, 1
      %s151 = scalar_select %p148, %s149, %s150
      %p154 = pneg %p148
      %p155 = scmp.eq.s32.totalorder %s20, 1
      %p156 = por %p154, %p155
      %p157 = scmp.ne.s32.totalorder %s149, %s152
      %p158 = scmp.eq.s32.totalorder %s20, 0
      %p159 = por %p157, %p158
      %p160 = scmp.ne.s32.totalorder %s149, %s152
      %p161 = scmp.eq.s32.totalorder %s25, 1
      %p162 = por %p160, %p161
      %p163 = scmp.ne.s32.totalorder %s152, %s153
      %p164 = scmp.eq.s32.totalorder %s25, 0
      %p165 = por %p163, %p164
      %p166 = scmp.ne.s32.totalorder %s152, %s153
      %p167 = scmp.eq.s32.totalorder %s26, 1
      %p168 = por %p166, %p167
      %p170 = scmp.ne.s32.totalorder %s153, %s169
      %p171 = scmp.eq.s32.totalorder %s26, 0
      %p172 = por %p170, %p171
      %p173 = scmp.le.s32.totalorder 1, %s20
      %p174 = scmp.lt.s32.totalorder %s20, 3
      %p175 = pnand %p173, %p174
      %p176 = pneg %p175
      // Predicated region
      $region9: #{tpu_custom_call.1} parent=5 // pred_check
        _
      $region10: #{tpu_custom_call.1} parent=5 // pred_check_branch
        %178 = sbr.rel (%p175) target = $region12
      $region11: #{tpu_custom_call.1} parent=5 // pred_region
        %s179 = ssub.s32 %s20, 1
        // Predicated region
        $region13: #{tpu_custom_call.1} parent=11 // pred_check
          %p180 = pneg %p116
        $region14: #{tpu_custom_call.1} parent=11 // pred_check_branch
          %182 = sbr.rel (%p180) target = $region16
        $region15: #{tpu_custom_call.1} parent=11 // pred_region
          %184 = vsyncadd [#allocation10], 0
          %s185 = sshll.u32 %s2, 4
          %s186 = int_to_ptr.hbm [resolvable:$true] %s185
          %s187 = sshll.u32 [#allocation11], 4
          %s188 = int_to_ptr.vmem [resolvable:$true] %s187
          %193 = dma.hbm_to_vmem [thread:$0]  %s186, 128, %s188, [#allocation10], 64, 64, 4
        $region16: #{tpu_custom_call.1} parent=11 // pred_fallthru
          _
        // Predicated region
        $region17: #{tpu_custom_call.1} parent=11 // pred_check
          %p194 = pneg %p137
        $region18: #{tpu_custom_call.1} parent=11 // pred_check_branch
          %196 = sbr.rel (%p194) target = $region20
        $region19: #{tpu_custom_call.1} parent=11 // pred_region
          %198 = vsyncadd [#allocation13], 0
          %s199 = sshll.u32 %s3, 4
          %s200 = int_to_ptr.hbm [resolvable:$true] %s199
          %s201 = sshll.u32 [#allocation12], 4
          %s202 = int_to_ptr.vmem [resolvable:$true] %s201
          %207 = dma.hbm_to_vmem [thread:$0]  %s200, 128, %s202, [#allocation13], 64, 64, 4
        $region20: #{tpu_custom_call.1} parent=11 // pred_fallthru
          _
      $region12: #{tpu_custom_call.1} parent=5 // pred_fallthru
        _
      %p208 = scmp.lt.s32.totalorder %s20, 2
      // Predicated region
      $region21: #{tpu_custom_call.1} parent=5 // pred_check
        %p209 = pneg %p208
      $region22: #{tpu_custom_call.1} parent=5 // pred_check_branch
        %211 = sbr.rel (%p209) target = $region24
      $region23: #{tpu_custom_call.1} parent=5 // pred_region
        // Predicated region
        $region25: #{tpu_custom_call.1} parent=23 // pred_check
          %p212 = pneg %p61
        $region26: #{tpu_custom_call.1} parent=23 // pred_check_branch
          %214 = sbr.rel (%p212) target = $region28
        $region27: #{tpu_custom_call.1} parent=23 // pred_region
          %s215 = sand.u32 %s51, 1
          %s216 = scalar_lea.sflag [#allocation7], %s215
          %s217 = sand.u32 %s51, 1
          %s218 = smul.addr %s217, 8
          %s219 = scalar_lea.vmem [#allocation6], %s218
          %221 = vsyncadd %s216, 0
          %s222 = sadd.s32 %s28, %s27
          %s223 = smul.addr %s222, 8
          %s224 = scalar_lea.hbm %s0, %s223
          %s226 = sshll.u32 %s224, 4
          %s227 = int_to_ptr.hbm [resolvable:$true] %s226
          %s228 = sshll.u32 %s219, 4
          %s229 = int_to_ptr.vmem [resolvable:$true] %s228
          %231 = dma.hbm_to_vmem [thread:$0]  %s227, 128, %s229, %s216
        $region28: #{tpu_custom_call.1} parent=23 // pred_fallthru
          _
        // Predicated region
        $region29: #{tpu_custom_call.1} parent=23 // pred_check
          %p232 = pneg %p89
        $region30: #{tpu_custom_call.1} parent=23 // pred_check_branch
          %234 = sbr.rel (%p232) target = $region32
        $region31: #{tpu_custom_call.1} parent=23 // pred_region
          %s235 = sand.u32 %s20, 1
          %s236 = scalar_lea.sflag [#allocation10], %s235
          %s237 = sand.u32 %s79, 1
          %s238 = smul.addr %s237, 8
          %s239 = scalar_lea.vmem [#allocation9], %s238
          %241 = vsyncadd %s236, 0
          %s242 = sadd.s32 %s29, %s27
          %s243 = smul.addr %s242, 8
          %s244 = scalar_lea.hbm %s1, %s243
          %s246 = sshll.u32 %s244, 4
          %s247 = int_to_ptr.hbm [resolvable:$true] %s246
          %s248 = sshll.u32 %s239, 4
          %s249 = int_to_ptr.vmem [resolvable:$true] %s248
          %251 = dma.hbm_to_vmem [thread:$0]  %s247, 128, %s249, %s236
        $region32: #{tpu_custom_call.1} parent=23 // pred_fallthru
          _
      $region24: #{tpu_custom_call.1} parent=5 // pred_fallthru
        _
      %p252 = scmp.le.s32.totalorder 1, %s20
      %p253 = scmp.lt.s32.totalorder %s20, 3
      %p254 = pnand %p252, %p253
      %p255 = pneg %p254
      // Predicated region
      $region33: #{tpu_custom_call.1} parent=5 // pred_check
        _
      $region34: #{tpu_custom_call.1} parent=5 // pred_check_branch
        %257 = sbr.rel (%p254) target = $region36
      $region35: #{tpu_custom_call.1} parent=5 // pred_region
        %s258 = ssub.s32 %s20, 1
        %s259 = sand.u32 %s54, 1
        %s260 = scalar_lea.sflag [#allocation7], %s259
        %s261 = sand.u32 %s54, 1
        %s262 = smul.addr %s261, 8
        %s263 = scalar_lea.vmem [#allocation6], %s262
        // Predicated region
        $region37: #{tpu_custom_call.1} parent=35 // pred_check
          %p264 = pneg %p67
        $region38: #{tpu_custom_call.1} parent=35 // pred_check_branch
          %266 = sbr.rel (%p264) target = $region40
        $region39: #{tpu_custom_call.1} parent=35 // pred_region
          %268 = dma.done %s260, 128
        $region40: #{tpu_custom_call.1} parent=35 // pred_fallthru
          _
        %s269 = sand.u32 %s25, 1
        %s270 = scalar_lea.sflag [#allocation10], %s269
        %s271 = sand.u32 %s82, 1
        %s272 = smul.addr %s271, 8
        %s273 = scalar_lea.vmem [#allocation9], %s272
        // Predicated region
        $region41: #{tpu_custom_call.1} parent=35 // pred_check
          %p274 = pneg %p95
        $region42: #{tpu_custom_call.1} parent=35 // pred_check_branch
          %276 = sbr.rel (%p274) target = $region44
        $region43: #{tpu_custom_call.1} parent=35 // pred_region
          %278 = dma.done %s270, 128
        $region44: #{tpu_custom_call.1} parent=35 // pred_fallthru
          _
        // Predicated region
        $region45: #{tpu_custom_call.1} parent=35 // pred_check
          %p279 = pneg %p116
        $region46: #{tpu_custom_call.1} parent=35 // pred_check_branch
          %281 = sbr.rel (%p279) target = $region48
        $region47: #{tpu_custom_call.1} parent=35 // pred_region
          %283 = dma.done [#allocation10], 128
        $region48: #{tpu_custom_call.1} parent=35 // pred_fallthru
          _
        // Predicated region
        $region49: #{tpu_custom_call.1} parent=35 // pred_check
          %p284 = pneg %p137
        $region50: #{tpu_custom_call.1} parent=35 // pred_check_branch
          %286 = sbr.rel (%p284) target = $region52
        $region51: #{tpu_custom_call.1} parent=35 // pred_region
          %288 = dma.done [#allocation13], 128
        $region52: #{tpu_custom_call.1} parent=35 // pred_fallthru
          _
        %s289 = sand.u32 %s54, 1
        %s290 = scalar_lea.sflag [#allocation7], %s289
        %s291 = sand.u32 %s54, 1
        %s292 = smul.addr %s291, 8
        %s293 = scalar_lea.vmem [#allocation6], %s292
        %p294 = pneg %p67
        %p295 = pneg %p64
        %s296 = sand.u32 %s25, 1
        %s297 = scalar_lea.sflag [#allocation10], %s296
        %s298 = sand.u32 %s82, 1
        %s299 = smul.addr %s298, 8
        %s300 = scalar_lea.vmem [#allocation9], %s299
        %p301 = pneg %p95
        %p302 = pneg %p92
        %p303 = pneg %p116
        %p304 = pneg %p113
        %p305 = pneg %p137
        %p306 = pneg %p134
        %p307 = pneg %p165
        %p308 = pneg %p162
        %s309 = sand.u32 %s152, 1
        %s310 = scalar_lea.sflag [#allocation8], %s309
        %s311 = sand.u32 %s152, 1
        %s312 = smul.addr %s311, 8
        %s313 = scalar_lea.vmem [#allocation14], %s312
        %p315 = scmp.eq.s32.totalorder %s32, 0
        // Predicated region
        $region53: #{tpu_custom_call.1} parent=35 // pred_check
          %p316 = pneg %p315
        $region54: #{tpu_custom_call.1} parent=35 // pred_check_branch
          %318 = sbr.rel (%p316) target = $region56
        $region55: #{tpu_custom_call.1} parent=35 // pred_region
          %v319 = vld [vmem:[%s263] sm:$0xff]
          %v320 = vpack.c.bf16 %v319, %v319
          %v321 = vld [vmem:[#allocation11] sm:$0xf]
          %v322 = vld [vmem:[#allocation11 + $0x4] sm:$0xf]
          %v325 = vunpack.c.l.b16 %v321
          %v326 = vunpack.c.l.b16 %v322
          %v327 = vpack.c.b16 %v326, %v325
          %vm329 = vcmask 130048
          %v331 = vsel %vm329, %v320, 0
          %333 = vmatpush.bf16.msra.mxu0 0
          %334 = vmatpush.bf16.msra.mxu0 0
          %335 = vmatpush.bf16.msra.mxu0 0
          %336 = vmatpush.bf16.msra.mxu0 0
          %337 = vmatpush.bf16.msra.mxu0 0
          %338 = vmatpush.bf16.msra.mxu0 0
          %339 = vmatpush.bf16.msra.mxu0 0
          %340 = vmatpush.bf16.msra.mxu0 %v327
          %341 = vmatmul.bf16.gmra.mxu0 %v331
          %v342 = vpop.f32.mrf.mxu0
          %v343 = vadd.f32 0.0, %v342
          %v344 = vpop.f32.mrf.mxu0
          %345 = vdwg.mxu0
          %v346 = vmul.f32 %v343, 0.25
          %v347 = vpack.c.bf16 %v346, %v346
          %vm348 = vcmask 125952
          %349 = vst.msk [vmem:[#allocation2] sm:$0xf] %vm348, %v347
          %vm350 = vcmask 7168
          %351 = vst.msk [vmem:[#allocation3] sm:$0xff] %vm350, -1e+30
          %352 = vst.msk [vmem:[#allocation4] sm:$0xff] %vm350, 0.0
          %353 = vst.msk [vmem:[#allocation5] sm:$0xff] %vm329, 0.0
        $region56: #{tpu_custom_call.1} parent=35 // pred_fallthru
          _
        %p354 = scmp.le.s32.totalorder %s32, %s31
        // Predicated region
        $region57: #{tpu_custom_call.1} parent=35 // pred_check
          %p355 = pneg %p354
        $region58: #{tpu_custom_call.1} parent=35 // pred_check_branch
          %357 = sbr.rel (%p355) target = $region60
        $region59: #{tpu_custom_call.1} parent=35 // pred_region
          %v358 = vld [vmem:[%s273] sm:$0xff]
          %v359 = vpack.c.bf16 %v358, %v358
          %v360 = vld [vmem:[#allocation12] sm:$0xf]
          %v361 = vld [vmem:[#allocation12 + $0x4] sm:$0xf]
          %v364 = vunpack.c.l.b16 %v360
          %v365 = vunpack.c.l.b16 %v361
          %v366 = vpack.c.b16 %v365, %v364
          %vm368 = vcmask 130048
          %v370 = vsel %vm368, %v359, 0
          %372 = vmatpush.bf16.msra.mxu0 0
          %373 = vmatpush.bf16.msra.mxu0 0
          %374 = vmatpush.bf16.msra.mxu0 0
          %375 = vmatpush.bf16.msra.mxu0 0
          %376 = vmatpush.bf16.msra.mxu0 0
          %377 = vmatpush.bf16.msra.mxu0 0
          %378 = vmatpush.bf16.msra.mxu0 0
          %379 = vmatpush.bf16.msra.mxu0 %v366
          %380 = vmatmul.bf16.gmra.mxu0 %v370
          %v381 = vpop.f32.mrf.mxu0
          %v382 = vadd.f32 0.0, %v381
          %v383 = vpop.f32.mrf.mxu0
          %384 = vdwg.mxu0
          %v385 = vpack.c.bf16 %v382, %v382
          %v386 = vld [vmem:[#allocation2] sm:$0xf]
          %v388 = vsel %vm368, %v386, 0
          %v391 = vsel %vm368, %v385, 0
          %393 = vmatpush.bf16.xpose.msra.mxu0 0
          %394 = vmatpush.bf16.xpose.msra.mxu0 0
          %395 = vmatpush.bf16.xpose.msra.mxu0 0
          %396 = vmatpush.bf16.xpose.msra.mxu0 0
          %397 = vmatpush.bf16.xpose.msra.mxu0 0
          %398 = vmatpush.bf16.xpose.msra.mxu0 0
          %399 = vmatpush.bf16.xpose.msra.mxu0 0
          %400 = vmatpush.bf16.xpose.msra.mxu0 %v391
          %401 = vmatmul.bf16.gmra.mxu0 %v388
          %v402 = vpop.f32.mrf.mxu0
          %v403 = vadd.f32 0.0, %v402
          %v404 = vpop.f32.mrf.mxu0
          %405 = vdwg.mxu0
          %s406 = smul.u32 %s31, 8
          %v407 = vlaneseq
          %v408 = vshrl.u32 %v407, 7
          %v409 = vstv %s406
          %v410 = vadd.s32 %v409, %v408
          %s411 = smul.u32 %s32, 8
          %v412 = vlaneseq
          %v413 = vand.u32 %v412, 127
          %v414 = vstv %s411
          %v415 = vadd.s32 %v414, %v413
          %vm416 = vcmp.gt.s32.totalorder %v415, %v410
          %v417 = vsel %vm416, -1e+30, %v403
          %v418 = vld [vmem:[#allocation3] sm:$0xff]
          %vm419 = vcmask 64512
          %v420 = vsel %vm419, %v417, -inf
          %421 = vmax.xlane.f32.xlu0 %v420
          %v422 = vpop.xlane.xlu0 %421
          %v423 = vmax.f32 %v418, %v422
          %v424 = vsub.f32 %v418, %v423
          %v425 = vmul.f32 %v424, 1.442695
          %v426 = vpow.pop %v425
          %428 = vset.pattern.permute.xlu0 0
          %429 = vperm.xlu0 %428, %v423
          %v430 = vpop.permute.xlu0 %429
          %v432 = vsub.f32 %v417, %v430
          %v433 = vmul.f32 %v432, 1.442695
          %v434 = vpow.pop %v433
          %v435 = vld [vmem:[#allocation4] sm:$0xff]
          %v436 = vmul.f32 %v426, %v435
          %v437 = vsel %vm419, %v434, 0.0
          %438 = vadd.xlane.f32.xlu0 %v437
          %v439 = vpop.xlane.xlu0 %438
          %v440 = vadd.f32 %v436, %v439
          %vm441 = vcmask 7168
          %442 = vst.msk [vmem:[#allocation4] sm:$0xff] %vm441, %v440
          %v443 = vld [vmem:[#allocation5] sm:$0xff]
          %445 = vset.pattern.permute.xlu0 0
          %446 = vperm.xlu0 %445, %v426
          %v447 = vpop.permute.xlu0 %446
          %v449 = vmul.f32 %v447, %v443
          %v450 = vpack.c.bf16 %v434, %v434
          %452 = vrot.lane.b32.xlu0 %v385, 112
          %v453 = vpop.permute.xlu0 %452
          %v455 = vsel %vm419, %v450, 0
          %vm457 = vcmask 1043456
          %v459 = vsel %vm457, %v453, 0
          %461 = vmatpush.bf16.msra.mxu0 0
          %462 = vmatpush.bf16.msra.mxu0 0
          %463 = vmatpush.bf16.msra.mxu0 0
          %464 = vmatpush.bf16.msra.mxu0 0
          %465 = vmatpush.bf16.msra.mxu0 0
          %466 = vmatpush.bf16.msra.mxu0 0
          %467 = vmatpush.bf16.msra.mxu0 0
          %468 = vmatpush.bf16.msra.mxu0 %v459
          %469 = vmatmul.bf16.gmra.mxu0 %v455
          %v470 = vpop.f32.mrf.mxu0
          %v471 = vadd.f32 0.0, %v470
          %v472 = vpop.f32.mrf.mxu0
          %473 = vdwg.mxu0
          %v474 = vadd.f32 %v449, %v471
          %475 = vst.msk [vmem:[#allocation5] sm:$0xff] %vm368, %v474
          %476 = vst.msk [vmem:[#allocation3] sm:$0xff] %vm441, %v423
        $region60: #{tpu_custom_call.1} parent=35 // pred_fallthru
          _
        // Predicated region
        $region61: #{tpu_custom_call.1} parent=35 // pred_check
          %p477 = pneg %p315
        $region62: #{tpu_custom_call.1} parent=35 // pred_check_branch
          %479 = sbr.rel (%p477) target = $region64
        $region63: #{tpu_custom_call.1} parent=35 // pred_region
          %v480 = vld [vmem:[#allocation4] sm:$0xff]
          %v481 = vrcp.pop %v480
          %v482 = vld [vmem:[#allocation5] sm:$0xff]
          %484 = vset.pattern.permute.xlu0 0
          %485 = vperm.xlu0 %484, %v481
          %v486 = vpop.permute.xlu0 %485
          %v488 = vmul.f32 %v482, %v486
          %vm489 = vcmask 130048
          %490 = vst.msk [vmem:[%s313] sm:$0xff] %vm489, %v488
        $region64: #{tpu_custom_call.1} parent=35 // pred_fallthru
          _
        %s491 = sand.u32 %s152, 1
        %s492 = scalar_lea.sflag [#allocation8], %s491
        %s493 = sand.u32 %s152, 1
        %s494 = smul.addr %s493, 8
        %s495 = scalar_lea.vmem [#allocation14], %s494
        // Predicated region
        $region65: #{tpu_custom_call.1} parent=35 // pred_check
          %p496 = pneg %p162
        $region66: #{tpu_custom_call.1} parent=35 // pred_check_branch
          %498 = sbr.rel (%p496) target = $region68
        $region67: #{tpu_custom_call.1} parent=35 // pred_region
          %500 = vsyncadd %s492, 0
          %s501 = sadd.s32 %s31, %s30
          %s502 = smul.addr %s501, 8
          %s503 = scalar_lea.hbm %s4, %s502
          %s505 = sshll.u32 %s495, 4
          %s506 = int_to_ptr.vmem [resolvable:$true] %s505
          %s507 = sshll.u32 %s503, 4
          %s508 = int_to_ptr.hbm [resolvable:$true] %s507
          %510 = dma.vmem_to_hbm [thread:$0]  %s506, 128, %s508, %s492
        $region68: #{tpu_custom_call.1} parent=35 // pred_fallthru
          _
      $region36: #{tpu_custom_call.1} parent=5 // pred_fallthru
        _
      %p511 = scmp.le.s32.totalorder 2, %s20
      // Predicated region
      $region69: #{tpu_custom_call.1} parent=5 // pred_check
        %p512 = pneg %p511
      $region70: #{tpu_custom_call.1} parent=5 // pred_check_branch
        %514 = sbr.rel (%p512) target = $region72
      $region71: #{tpu_custom_call.1} parent=5 // pred_region
        %s515 = ssub.s32 %s20, 2
        // Predicated region
        $region73: #{tpu_custom_call.1} parent=71 // pred_check
          %p516 = pneg %p168
        $region74: #{tpu_custom_call.1} parent=71 // pred_check_branch
          %518 = sbr.rel (%p516) target = $region76
        $region75: #{tpu_custom_call.1} parent=71 // pred_region
          %s519 = sand.u32 %s153, 1
          %s520 = scalar_lea.sflag [#allocation8], %s519
          %s521 = sand.u32 %s153, 1
          %s522 = smul.addr %s521, 8
          %s523 = scalar_lea.vmem [#allocation14], %s522
          %525 = dma.done %s520, 128
        $region76: #{tpu_custom_call.1} parent=71 // pred_fallthru
          _
      $region72: #{tpu_custom_call.1} parent=5 // pred_fallthru
        _
    $region6: #{tpu_custom_call.1} parent=1 // loop_footer
      %s24 = sadd.s32 1, %s20
    $region7: #{tpu_custom_call.1} parent=1 // loop_footer_branch
      %19 = sbr.rel target = $region3
    $region8: #{tpu_custom_call.1} parent=1 // loop_exit
      _
    %526 = vsyncpa [#allocation7], 1
    %s527 = scalar_lea.sflag [#allocation7], 1
    %528 = vsyncpa %s527, 1
    %529 = vsyncpa [#allocation10], 1
    %s530 = scalar_lea.sflag [#allocation10], 1
    %531 = vsyncpa %s530, 1
    %532 = vsyncpa [#allocation13], 1
    %533 = vsyncpa [#allocation8], 1
    %s534 = scalar_lea.sflag [#allocation8], 1
    %535 = vsyncpa %s534, 1

</llo_original>
